<compile_context>
chip_gen: v7x
topology: tpu7x:2x2x1
jax: 0.10.0
libtpu: 0.0.40
codegen_flags: <defaults>
</compile_context>

<pallas_src>
from functools import partial, reduce

import jax
import jax.numpy as jnp
from jax.experimental import pallas as pl
from jax.experimental.pallas import tpu as pltpu

# ----------------------------------------------------------------------------
# Config — matches PatchReconstructor defaults (non-parallel branch).
# ----------------------------------------------------------------------------
SCALES = [1, 2]          # len(scales) = 2
MARGIN = [1, 1]
CHANNELS = 3
WIDTH = 64
DEPTH = 8
LINEAR = True            # default: no ReLU between layers
BIAS = False             # default: bias-free Linear layers

PATCH_H = 1 + 2 * MARGIN[0]   # 3
PATCH_W = 1 + 2 * MARGIN[1]   # 3
IN_DIM = CHANNELS * PATCH_H * PATCH_W * len(SCALES)   # 54

TB_MAX_FUSED = 16384     # max batch-tile rows, fused (LINEAR=True) path
TB_MAX_MLP = 4096        # max batch-tile rows, un-fused (ReLU) path
MIN_GRID_STEPS = 8       # keep several steps per TensorCore (megacore + overlap)
# Lane-padded, double-buffered footprint at TB=16384 is ~32 MiB (x + out each
# TB*128*4 B per buffer).  48 MiB is above v5e's 16 MiB scoped default and
# leaves 16 MiB headroom on v7x's 64 MiB physical VMEM.
VMEM_LIMIT_BYTES = 48 * 1024 * 1024


def _round_up(x, m):
    return (x + m - 1) // m * m


def _pick_batch_tile(b, tb_max):
    """Sublane-aligned batch tile, as large as possible while keeping at least
    MIN_GRID_STEPS grid steps once the batch is big enough for it to matter."""
    tb = _round_up(max(1, -(-b // MIN_GRID_STEPS)), 8)
    return max(8, min(tb, tb_max))


def _cheap_sigmoid(y):
    # sigmoid(y) == 0.5*(tanh(y/2) + 1): one EUP push per vreg.
    return 0.5 * jnp.tanh(0.5 * y) + 0.5


# ----------------------------------------------------------------------------
# Kernels
# ----------------------------------------------------------------------------
def fused_kernel(x_ref, w_ref, o_ref):
    """LINEAR=True path: sigmoid(x_tile @ W_fused), one MXU matmul per tile.

    Default precision -> single bf16 MXU pass with f32 accumulation.
    """
    y = jnp.dot(x_ref[...], w_ref[...], preferred_element_type=jnp.float32)
    o_ref[...] = _cheap_sigmoid(y).astype(o_ref.dtype)


def mlp_kernel(x_ref, w_in_ref, w_hid_ref, w_out_ref, o_ref, *, depth, linear):
    """LINEAR=False path: full (un-fusable) layer chain per batch tile.

    bf16 activations/weights, f32 accumulation.
    """
    h = jnp.dot(x_ref[...].astype(jnp.bfloat16), w_in_ref[...],
                preferred_element_type=jnp.float32)
    if not linear:
        h = jnp.maximum(h, 0.0)
    for layer in range(depth - 2):
        h = jnp.dot(h.astype(jnp.bfloat16), w_hid_ref[layer],
                    preferred_element_type=jnp.float32)
        if not linear:
            h = jnp.maximum(h, 0.0)
    y = jnp.dot(h.astype(jnp.bfloat16), w_out_ref[...],
                preferred_element_type=jnp.float32)
    o_ref[...] = _cheap_sigmoid(y).astype(o_ref.dtype)


# ----------------------------------------------------------------------------
# Wrapper
# ----------------------------------------------------------------------------
def fuse_weights(w_in, w_hid, w_out):
    """Collapse the bias-free linear chain into one (IN_DIM, CHANNELS) matrix."""
    mats = [w_in] + [w_hid[l] for l in range(w_hid.shape[0])] + [w_out]
    return reduce(
        lambda a, b: jnp.dot(a, b, precision=jax.lax.Precision.HIGHEST), mats)


def patch_reconstructor_forward(x, w_in, w_hid, w_out, *, linear=LINEAR):
    """Equivalent of PatchReconstructor.forward (parallel=False)."""
    b = x.shape[0]
    x_flat = x.reshape(b, -1)                 # input.view(B, -1); keep dtype
    assert x_flat.shape[1] == IN_DIM, (x_flat.shape, IN_DIM)

    compiler_params = pltpu.CompilerParams(
        dimension_semantics=("parallel",),    # megacore sharding on v7x
        vmem_limit_bytes=VMEM_LIMIT_BYTES,
    )

    if linear:
        tb = _pick_batch_tile(b, TB_MAX_FUSED)
        grid = (pl.cdiv(b, tb),)
        w_fused = fuse_weights(w_in, w_hid, w_out)          # (IN_DIM, CHANNELS)
        cost = pl.CostEstimate(
            flops=2 * b * IN_DIM * CHANNELS,
            transcendentals=b * CHANNELS,
            bytes_accessed=(b * IN_DIM * x_flat.dtype.itemsize
                            + b * CHANNELS * 4
                            + IN_DIM * CHANNELS * 4),
        )
        out = pl.pallas_call(
            fused_kernel,
            out_shape=jax.ShapeDtypeStruct((b, CHANNELS), jnp.float32),
            grid=grid,
            in_specs=[
                pl.BlockSpec((tb, IN_DIM), lambda i: (i, 0)),        # x tiles
                pl.BlockSpec((IN_DIM, CHANNELS), lambda i: (0, 0)),  # resident
            ],
            out_specs=pl.BlockSpec((tb, CHANNELS), lambda i: (i, 0)),
            compiler_params=compiler_params,
            cost_estimate=cost,
        )(x_flat, w_fused)
    else:
        tb = _pick_batch_tile(b, TB_MAX_MLP)
        grid = (pl.cdiv(b, tb),)
        w_in_b = w_in.astype(jnp.bfloat16)
        w_hid_b = w_hid.astype(jnp.bfloat16)
        w_out_b = w_out.astype(jnp.bfloat16)
        kernel = partial(mlp_kernel, depth=DEPTH, linear=linear)
        out = pl.pallas_call(
            kernel,
            out_shape=jax.ShapeDtypeStruct((b, CHANNELS), jnp.float32),
            grid=grid,
            in_specs=[
                pl.BlockSpec((tb, IN_DIM), lambda i: (i, 0)),        # x tiles
                pl.BlockSpec(w_in_b.shape, lambda i: (0, 0)),        # resident
                pl.BlockSpec(w_hid_b.shape, lambda i: (0, 0, 0)),    # resident
                pl.BlockSpec(w_out_b.shape, lambda i: (0, 0)),       # resident
            ],
            out_specs=pl.BlockSpec((tb, CHANNELS), lambda i: (i, 0)),
            compiler_params=compiler_params,
        )(x_flat, w_in_b, w_hid_b, w_out_b)

    return out


# ----------------------------------------------------------------------------
# Deterministic parameter init (mimics torch.nn.Linear default U(-1/sqrt(fan_in), +)).
# Weights stored as (in, out), i.e. the transpose of torch's (out, in) layout.
# ----------------------------------------------------------------------------
def init_params(key):
    k_in, k_hid, k_out = jax.random.split(key, 3)
    bnd_in = 1.0 / jnp.sqrt(IN_DIM)
    bnd_w = 1.0 / jnp.sqrt(WIDTH)
    w_in = jax.random.uniform(k_in, (IN_DIM, WIDTH), jnp.float32,
                              minval=-bnd_in, maxval=bnd_in)
    w_hid = jax.random.uniform(k_hid, (DEPTH - 2, WIDTH, WIDTH), jnp.float32,
                               minval=-bnd_w, maxval=bnd_w)
    w_out = jax.random.uniform(k_out, (WIDTH, CHANNELS), jnp.float32,
                               minval=-bnd_w, maxval=bnd_w)
    return w_in, w_hid, w_out


# Pure-JAX reference (layer-by-layer, full-precision f32 matmuls).
def reference_forward(x, w_in, w_hid, w_out, *, linear=LINEAR):
    hi = jax.lax.Precision.HIGHEST
    h = jnp.dot(x.reshape(x.shape[0], -1).astype(jnp.float32), w_in, precision=hi)
    if not linear:
        h = jnp.maximum(h, 0.0)
    for layer in range(DEPTH - 2):
        h = jnp.dot(h, w_hid[layer], precision=hi)
        if not linear:
            h = jnp.maximum(h, 0.0)
    return jax.nn.sigmoid(jnp.dot(h, w_out, precision=hi))


if __name__ == "__main__":
    key = jax.random.PRNGKey(0)
    k_x, k_x2, k_p = jax.random.split(key, 3)
    w_in, w_hid, w_out = init_params(k_p)

    # Patch input: (batch, channels, n_scales, patch_h, patch_w) -> flattens to IN_DIM.
    batch = 2
    x = jax.random.normal(k_x, (batch, CHANNELS, len(SCALES), PATCH_H, PATCH_W),
                          dtype=jnp.float32)

    # Fused (LINEAR=True, default config) path — single (ragged) tile.
    out = jax.block_until_ready(patch_reconstructor_forward(x, w_in, w_hid, w_out))
    ref = reference_forward(x, w_in, w_hid, w_out)
    assert out.shape == (batch, CHANNELS), out.shape
    assert jnp.allclose(out, ref, atol=2e-3, rtol=2e-3), (out, ref)

    # Multi-step grid with a ragged final tile (no wrapper-side padding).
    batch2 = 300
    x2 = jax.random.normal(k_x2, (batch2, CHANNELS, len(SCALES), PATCH_H, PATCH_W),
                           dtype=jnp.float32)
    out2 = jax.block_until_ready(patch_reconstructor_forward(x2, w_in, w_hid, w_out))
    ref2 = reference_forward(x2, w_in, w_hid, w_out)
    assert out2.shape == (batch2, CHANNELS), out2.shape
    assert jnp.allclose(out2, ref2, atol=2e-3, rtol=2e-3), \
        float(jnp.max(jnp.abs(out2 - ref2)))

    # Also exercise the un-fused (ReLU) kernel path once for coverage.
    out_relu = jax.block_until_ready(
        patch_reconstructor_forward(x, w_in, w_hid, w_out, linear=False))
    ref_relu = reference_forward(x, w_in, w_hid, w_out, linear=False)
    assert jnp.allclose(out_relu, ref_relu, atol=2e-3, rtol=2e-3), (out_relu, ref_relu)

    print("KERNEL_OK")
</pallas_src>

<mosaic_0001>
module attributes {stable_mosaic.version = 11 : i64} {
  func.func @fused_kernel(%arg0: i32, %arg1: memref<8x54xf32, #tpu.memory_space<vmem>>, %arg2: memref<54x3xf32, #tpu.memory_space<vmem>>, %arg3: memref<8x3xf32, #tpu.memory_space<vmem>>) attributes {dimension_semantics = [#tpu.dimension_semantics<parallel>], iteration_bounds = array<i64: 1>, scalar_prefetch = 0 : i64, scratch_operands = 0 : i64, tpu.core_type = #tpu.core_type<tc>, window_params = [{transform_indices = @transform_0, window_bounds = array<i64: 8, 54>}, {pipeline_mode = #tpu.pipeline_mode<synchronous>, transform_indices = @transform_1, window_bounds = array<i64: 54, 3>}, {transform_indices = @transform_2, window_bounds = array<i64: 8, 3>}]} {
    %c0 = arith.constant 0 : index
    %c0_0 = arith.constant 0 : index
    %0 = vector.load %arg1[%c0, %c0_0] : memref<8x54xf32, #tpu.memory_space<vmem>>, vector<8x54xf32>
    %c0_1 = arith.constant 0 : index
    %c0_2 = arith.constant 0 : index
    %1 = vector.load %arg2[%c0_1, %c0_2] : memref<54x3xf32, #tpu.memory_space<vmem>>, vector<54x3xf32>
    %cst = arith.constant dense<0.000000e+00> : vector<8x3xf32>
    %2 = tpu.matmul %0, %1, %cst {dimension_numbers = #tpu.dot_dimension_numbers<[1], [0], [0], [1], [0, 0, 1, 1], [], []>} : vector<8x54xf32>, vector<54x3xf32>, vector<8x3xf32> -> vector<8x3xf32>
    %cst_3 = arith.constant 5.000000e-01 : f32
    %3 = vector.broadcast %cst_3 : f32 to vector<8x3xf32>
    %4 = arith.mulf %3, %2 : vector<8x3xf32>
    %5 = math.tanh %4 : vector<8x3xf32>
    %cst_4 = arith.constant 5.000000e-01 : f32
    %6 = vector.broadcast %cst_4 : f32 to vector<8x3xf32>
    %7 = arith.mulf %6, %5 : vector<8x3xf32>
    %cst_5 = arith.constant 5.000000e-01 : f32
    %8 = vector.broadcast %cst_5 : f32 to vector<8x3xf32>
    %9 = arith.addf %7, %8 : vector<8x3xf32>
    %c0_6 = arith.constant 0 : index
    %c0_7 = arith.constant 0 : index
    %10 = vector.load %arg3[%c0_6, %c0_7] : memref<8x3xf32, #tpu.memory_space<vmem>>, vector<8x3xf32>
    tpu.vector_store %arg3[%c0_6, %c0_7], %9 {strides = array<i32>} : memref<8x3xf32, #tpu.memory_space<vmem>>, vector<8x3xf32>,
    return
  }
  func.func @transform_0(%arg0: i32) -> (i32, i32) {
    %c0_i32 = arith.constant 0 : i32
    %c0_i32_0 = arith.constant 0 : i32
    return %arg0, %c0_i32 : i32, i32
  }
  func.func @transform_1(%arg0: i32) -> (i32, i32) {
    %c0_i32 = arith.constant 0 : i32
    %c0_i32_0 = arith.constant 0 : i32
    %c0_i32_1 = arith.constant 0 : i32
    return %c0_i32, %c0_i32_0 : i32, i32
  }
  func.func @transform_2(%arg0: i32) -> (i32, i32) {
    %c0_i32 = arith.constant 0 : i32
    %c0_i32_0 = arith.constant 0 : i32
    return %arg0, %c0_i32 : i32, i32
  }
}

</mosaic_0001>

<llo_original>
// kernel: tpu_custom_call.1
$region0: #{tpu_custom_call.1}
  #allocation0 [shape = 'u32[]', space=smem, size = 0x4, offset = 0x4, fixed_abs, tag = 'smem constant byte address 0x4 - core index']
  #allocation1 [shape = 'u32[144,128]{1,0:T(1,128)}', space=vmem, size = 0x12000, scoped, tag = 'internal scratch']
  %s0 = inlined_call_operand.vmem [shape: f32[2,54], index: 0, kind: input, shape index: {}]
  %s1 = inlined_call_operand.vmem [shape: f32[54,3], index: 1, kind: input, shape index: {}]
  %s2 = inlined_call_operand.hbm [shape: f32[2,3], index: 2, kind: output, shape index: {}]
  %s3 = sld [smem:[#allocation0]]
  $region18: #{tpu_custom_call.1} parent=0
    _
  %s5 = ssub.s32 1, %s3
  %s6 = scalar_select 0, %s5, %s3
  $region1: #{tpu_custom_call.1} parent=0
    #allocation2 [shape = 'u8[4096]{0}', space=vmem, size = 0x1000, scoped, tag = 'output window, operand 0, single buffered']
    #allocation3 [shape = 's32[1]{0}', space=sflag, size = 0x4, scoped, tag = 'scoped memory for tpu_custom_call.1']
    %7 = vsyncpa [#allocation3], 0
    // Predicated region
    $region2: #{tpu_custom_call.1} parent=1 // pred_check
      _
    $region3: #{tpu_custom_call.1} parent=1 // pred_check_branch
      %9 = sbr.rel (0) target = $region5
    $region4: #{tpu_custom_call.1} parent=1 // pred_region
      _
    $region5: #{tpu_custom_call.1} parent=1 // pred_fallthru
      _
    // Predicated region
    $region6: #{tpu_custom_call.1} parent=1 // pred_check
      _
    $region7: #{tpu_custom_call.1} parent=1 // pred_check_branch
      %11 = sbr.rel (0) target = $region9
    $region8: #{tpu_custom_call.1} parent=1 // pred_region
      _
    $region9: #{tpu_custom_call.1} parent=1 // pred_fallthru
      _
    %v12 = vld [vmem:[%s0] sm:$0xff]
    %v13 = vld [vmem:[%s1] sm:$0xff]
    %v14 = vld [vmem:[%s1 + $0x8] sm:$0xff]
    %v15 = vld [vmem:[%s1 + $0x10] sm:$0xff]
    %v16 = vld [vmem:[%s1 + $0x18] sm:$0xff]
    %v17 = vld [vmem:[%s1 + $0x20] sm:$0xff]
    %v18 = vld [vmem:[%s1 + $0x28] sm:$0xff]
    %v19 = vld [vmem:[%s1 + $0x30] sm:$0x3f]
    %vm20 = vcmask 441344
    %v22 = vsel %vm20, %v12, 0
    %vm24 = vcmask 1045504
    %v26 = vsel %vm24, %v19, 0
    %28 = vmatprep.subr.mxu0 0.0
    %29 = vmatpush1.msra.mxu0 %v13
    %30 = vmatprep.subr.mxu0 0.0
    %31 = vmatpush1.msra.mxu0 %v14
    %32 = vmatprep.subr.mxu0 0.0
    %33 = vmatpush1.msra.mxu0 %v15
    %34 = vmatprep.subr.mxu0 0.0
    %35 = vmatpush1.msra.mxu0 %v16
    %36 = vmatprep.subr.mxu0 0.0
    %37 = vmatpush1.msra.mxu0 %v17
    %38 = vmatprep.subr.mxu0 0.0
    %39 = vmatpush1.msra.mxu0 %v18
    %40 = vmatprep.subr.mxu0 0.0
    %41 = vmatpush1.msra.mxu0 %v26
    %42 = vmatprep.subr.mxu0 0.0
    %43 = vmatpush1.msra.mxu0 0.0
    %44 = vmatprep.subr.mxu0 0.0
    %45 = vmatpush1.msra.mxu0 0.0
    %46 = vmatprep.subr.mxu0 0.0
    %47 = vmatpush1.msra.mxu0 0.0
    %48 = vmatprep.subr.mxu0 0.0
    %49 = vmatpush1.msra.mxu0 0.0
    %50 = vmatprep.subr.mxu0 0.0
    %51 = vmatpush1.msra.mxu0 0.0
    %52 = vmatprep.subr.mxu0 0.0
    %53 = vmatpush1.msra.mxu0 0.0
    %54 = vmatprep.subr.mxu0 0.0
    %55 = vmatpush1.msra.mxu0 0.0
    %56 = vmatprep.subr.mxu0 0.0
    %57 = vmatpush1.msra.mxu0 0.0
    %58 = vmatprep.subr.mxu0 0.0
    %59 = vmatpush1.msra.mxu0 0.0
    %60 = vmatprep.subr.mxu0 0.0
    %61 = vmatpush1.msra.mxu0 0.0
    %62 = vmatprep.subr.mxu0 0.0
    %63 = vmatpush1.msra.mxu0 0.0
    %64 = vmatprep.subr.mxu0 0.0
    %65 = vmatpush1.msra.mxu0 0.0
    %66 = vmatprep.subr.mxu0 0.0
    %67 = vmatpush1.msra.mxu0 0.0
    %68 = vmatprep.subr.mxu0 0.0
    %69 = vmatpush1.msra.mxu0 0.0
    %70 = vmatprep.subr.mxu0 0.0
    %71 = vmatpush1.msra.mxu0 0.0
    %72 = vmatprep.subr.mxu0 0.0
    %73 = vmatpush1.msra.mxu0 0.0
    %74 = vmatprep.subr.mxu0 0.0
    %75 = vmatpush1.msra.mxu0 0.0
    %76 = vmatprep.subr.mxu0 0.0
    %77 = vmatpush1.msra.mxu0 0.0
    %78 = vmatprep.subr.mxu0 0.0
    %79 = vmatpush1.msra.mxu0 0.0
    %80 = vmatprep.subr.mxu0 0.0
    %81 = vmatpush1.msra.mxu0 0.0
    %82 = vmatprep.subr.mxu0 0.0
    %83 = vmatpush1.msra.mxu0 0.0
    %84 = vmatprep.subr.mxu0 0.0
    %85 = vmatpush1.msra.mxu0 0.0
    %86 = vmatprep.subr.mxu0 0.0
    %87 = vmatpush1.msra.mxu0 0.0
    %88 = vmatprep.subr.mxu0 0.0
    %89 = vmatpush1.msra.mxu0 0.0
    %90 = vmatprep.subr.mxu0 0.0
    %91 = vmatpush1.msra.mxu0 0.0
    %92 = vmatprep.mubr.f32.mxu0 0.0
    %93 = vmatmul.mubr.f32.gmra.mrb[0].mxu0 %v22
    %v94 = vpop.f32.mrb[0].mxu0
    %v95 = vadd.f32 0.0, %v94
    %v96 = vpop.f32.mrb[0].mxu0
    %97 = vdwg.mxu0
    %v98 = vmul.f32 %v95, 0.5
    %v99 = vtanh.pop %v98
    %v100 = vmul.f32 %v99, 0.5
    %v101 = vadd.f32 %v100, 0.5
    %vm102 = vcmask 23552
    %103 = vst.msk [vmem:[#allocation2] sm:$0xff] %vm102, %v101
    // Predicated region
    $region10: #{tpu_custom_call.1} parent=1 // pred_check
      _
    $region11: #{tpu_custom_call.1} parent=1 // pred_check_branch
      %105 = sbr.rel (0) target = $region13
    $region12: #{tpu_custom_call.1} parent=1 // pred_region
      %s107 = ssub.s32 128, 32
      %108 = vsyncadd [#allocation3], %s107
      %s109 = sshll.u32 [#allocation2], 4
      %s110 = int_to_ptr.vmem [resolvable:$true] %s109
      %115 = dma.vmem_to_hbm [thread:$0]  %s110, 32, %s2, [#allocation3], 32, 32, 2
    $region13: #{tpu_custom_call.1} parent=1 // pred_fallthru
      _
    // Predicated region
    $region14: #{tpu_custom_call.1} parent=1 // pred_check
      _
    $region15: #{tpu_custom_call.1} parent=1 // pred_check_branch
      %117 = sbr.rel (0) target = $region17
    $region16: #{tpu_custom_call.1} parent=1 // pred_region
      %118 = dma.done [#allocation3], 128
    $region17: #{tpu_custom_call.1} parent=1 // pred_fallthru
      _
    %119 = vsyncpa [#allocation3], 1

</llo_original>
